<compile_context>
chip_gen: v5e
topology: v5e:2x2
jax: 0.10.0
libtpu: 0.0.40
codegen_flags: <defaults>
</compile_context>

<pallas_src>
import functools

import jax
import jax.numpy as jnp
from jax import lax
from jax.experimental import pallas as pl
from jax.experimental.pallas import tpu as pltpu


def _tpu_budgets():
    """Per-generation (per-input block target bytes, scoped VMEM limit bytes)."""
    try:
        cap = pltpu.get_tpu_info().vmem_capacity_bytes
    except Exception:
        cap = 64 << 20  # conservative fallback (v7x-sized VMEM)
    if cap >= (100 << 20):
        # v5e / v6e: 128 MiB physical VMEM.  2 inputs x 2 buffers x 8 MiB + f32
        # temps + tiny acc stays well under the 64 MiB scoped limit.
        return 8 << 20, 64 << 20
    # v7x: 64 MiB physical VMEM per TensorCore -> stay <= ~40 MiB scoped.
    return 5 << 20, 40 << 20


def _wmse_rows_kernel(p_ref, t_ref, w_ref, o_ref, acc_ref, *,
                      inv_m, rows, rows_tile, num_k_per, groups, need_mask):
    """Dense path (T*H*W % 128 == 0).

    Grid: (split, N, K).  Block shapes (leading dims squeezed):
       p_ref, t_ref : (C, rows_tile, 128)
       w_ref        : (C, 1)        resident f32 weights
       o_ref        : (C, 1)        per-(split, batch) weighted partial
       acc_ref      : (C, acc_sub, 128) f32 scratch (acc_sub = 8 normally)
    """
    k = pl.program_id(2)

    @pl.when(k == 0)
    def _():
        acc_ref[...] = jnp.zeros_like(acc_ref)

    d = p_ref[...].astype(jnp.float32) - t_ref[...].astype(jnp.float32)
    sq = d * d                                          # (C, rows_tile, 128)

    if need_mask:  # static: only emitted when some block overhangs `rows`
        kb = pl.program_id(0) * num_k_per + k           # global row-block index
        valid = rows - kb * rows_tile
        row = lax.broadcasted_iota(jnp.int32, sq.shape, dimension=1)
        sq = jnp.where(row < valid, sq, 0.0)             # select: no NaN leaks

    if groups > 1:
        # Free retile (pure major re-indexing) + VPU adds down to (C, 8, 128).
        sq = sq.reshape(sq.shape[0], groups, 8, 128).sum(axis=1)
    acc_ref[...] += sq                                    # VPU-only hot loop

    @pl.when(k == pl.num_programs(2) - 1)
    def _():
        per_lane = jnp.sum(acc_ref[...], axis=1)          # (C, 128)  XLU, once
        total = jnp.sum(per_lane, axis=1, keepdims=True)  # (C, 1)    XLU, once
        o_ref[...] = (total * inv_m) * w_ref[...]


def _wmse_flat_kernel(p_ref, t_ref, w_ref, o_ref, acc_ref, *,
                      inv_m, m_sp, cols_tile, num_k_per, need_mask):
    """Fallback path (T*H*W % 128 != 0): flat lane axis, tail masked in-kernel.

    Block shapes (leading dims squeezed):
       p_ref, t_ref : (C, cols_tile)
       w_ref        : (C, 1)
       o_ref        : (C, 1)
       acc_ref      : (C, 1) f32 scratch
    """
    k = pl.program_id(2)

    @pl.when(k == 0)
    def _():
        acc_ref[...] = jnp.zeros_like(acc_ref)

    d = p_ref[...].astype(jnp.float32) - t_ref[...].astype(jnp.float32)
    sq = d * d                                            # (C, cols_tile)

    if need_mask:
        kb = pl.program_id(0) * num_k_per + k
        valid = m_sp - kb * cols_tile
        lane = lax.broadcasted_iota(jnp.int32, sq.shape, dimension=1)
        sq = jnp.where(lane < valid, sq, 0.0)

    acc_ref[...] += jnp.sum(sq, axis=1, keepdims=True)    # (C, 1)

    @pl.when(k == pl.num_programs(2) - 1)
    def _():
        o_ref[...] = (acc_ref[...] * inv_m) * w_ref[...]


def weighted_spatial_mse_loss(preds, trues, weights):
    """preds, trues: (N, C, T, H, W) (f32 or bf16); weights: (C,).

    Returns the per-channel weighted MSE, shape (C,), float32.
    """
    N, C, T, H, W = preds.shape
    m_sp = T * H * W
    inv_m = 1.0 / float(N * m_sp)
    itemsize = jnp.dtype(preds.dtype).itemsize
    block_target, vmem_limit = _tpu_budgets()
    # ~1 block of extra headroom for f32 temps besides 2 inputs x 2 buffers.
    max_block_bytes = max(vmem_limit // 5, 1 << 20)

    w2 = weights.reshape(C, 1).astype(jnp.float32)

    if m_sp % 128 == 0:
        # ---- dense path: free reshape, no pad, lane+sublane-dense blocks ----
        rows = m_sp // 128
        p = preds.reshape(N, C, rows, 128)
        t = trues.reshape(N, C, rows, 128)

        bytes_per_row = C * 128 * itemsize
        rows_cap = max(8, max_block_bytes // bytes_per_row)
        # Floor of 32 rows keeps per-channel contiguous DMA runs >= 16 KiB for
        # large C; cap keeps 2 inputs x 2 buffers + temps inside the budget.
        # TODO(synk): add a C-tile grid axis if C is so large that even 8 rows
        # per block exceeds the VMEM budget.
        rows_tile = min(max(32, block_target // bytes_per_row), rows_cap, rows)
        if rows >= 8:
            rows_tile = max(8, rows_tile - rows_tile % 8)   # sublane aligned
        else:
            rows_tile = rows                                # full extent (legal)

        num_k_total = pl.cdiv(rows, rows_tile)
        # Guarantee work for both v7x TensorCores when N is odd / N == 1.
        split = 2 if (N % 2 == 1 and num_k_total >= 2) else 1
        num_k_per = pl.cdiv(num_k_total, split)
        need_mask = (split * num_k_per * rows_tile) != rows

        if rows_tile % 8 == 0 and rows_tile > 8:
            groups, acc_sub = rows_tile // 8, 8
        else:
            groups, acc_sub = 1, rows_tile

        if split == 1:
            in_map = lambda s, n, k: (n, 0, k, 0)
        else:
            def in_map(s, n, k):
                # Clamp so a fully-overhanging block DMAs in-bounds data; the
                # in-kernel mask (computed from the unclamped index) zeroes it.
                return (n, 0, jnp.minimum(s * num_k_per + k, num_k_total - 1), 0)

        kernel = functools.partial(
            _wmse_rows_kernel, inv_m=inv_m, rows=rows, rows_tile=rows_tile,
            num_k_per=num_k_per, groups=groups, need_mask=need_mask)

        partials = pl.pallas_call(
            kernel,
            out_shape=jax.ShapeDtypeStruct((split, N, C, 1), jnp.float32),
            grid_spec=pltpu.PrefetchScalarGridSpec(
                num_scalar_prefetch=0,
                grid=(split, N, num_k_per),
                in_specs=[
                    pl.BlockSpec((None, C, rows_tile, 128), in_map),
                    pl.BlockSpec((None, C, rows_tile, 128), in_map),
                    pl.BlockSpec((C, 1), lambda s, n, k: (0, 0)),  # resident
                ],
                out_specs=pl.BlockSpec((None, None, C, 1),
                                       lambda s, n, k: (s, n, 0, 0)),
                scratch_shapes=[pltpu.VMEM((C, acc_sub, 128), jnp.float32)],
            ),
            compiler_params=pltpu.CompilerParams(
                dimension_semantics=("parallel", "parallel", "arbitrary"),
                vmem_limit_bytes=vmem_limit,
            ),
        )(p, t, w2)
    else:
        # ---- fallback path: flat lane axis, tail masked in-kernel (no pad) ----
        p = preds.reshape(N, C, m_sp)
        t = trues.reshape(N, C, m_sp)

        c_pad = -(-C // 8) * 8                      # sublane-padded VMEM footprint
        bytes_per_col128 = c_pad * 128 * itemsize
        cols128_cap = max(4, max_block_bytes // bytes_per_col128)
        cols128 = min(max(32, block_target // bytes_per_col128), cols128_cap)
        cols_tile = cols128 * 128
        if cols_tile >= m_sp:
            cols_tile = m_sp                         # full extent (always legal)

        num_k_total = pl.cdiv(m_sp, cols_tile)
        split = 2 if (N % 2 == 1 and num_k_total >= 2) else 1
        num_k_per = pl.cdiv(num_k_total, split)
        need_mask = (split * num_k_per * cols_tile) != m_sp

        if split == 1:
            in_map = lambda s, n, k: (n, 0, k)
        else:
            def in_map(s, n, k):
                return (n, 0, jnp.minimum(s * num_k_per + k, num_k_total - 1))

        kernel = functools.partial(
            _wmse_flat_kernel, inv_m=inv_m, m_sp=m_sp, cols_tile=cols_tile,
            num_k_per=num_k_per, need_mask=need_mask)

        partials = pl.pallas_call(
            kernel,
            out_shape=jax.ShapeDtypeStruct((split, N, C, 1), jnp.float32),
            grid_spec=pltpu.PrefetchScalarGridSpec(
                num_scalar_prefetch=0,
                grid=(split, N, num_k_per),
                in_specs=[
                    pl.BlockSpec((None, C, cols_tile), in_map),
                    pl.BlockSpec((None, C, cols_tile), in_map),
                    pl.BlockSpec((C, 1), lambda s, n, k: (0, 0)),
                ],
                out_specs=pl.BlockSpec((None, None, C, 1),
                                       lambda s, n, k: (s, n, 0, 0)),
                scratch_shapes=[pltpu.VMEM((C, 1), jnp.float32)],
            ),
            compiler_params=pltpu.CompilerParams(
                dimension_semantics=("parallel", "parallel", "arbitrary"),
                vmem_limit_bytes=vmem_limit,
            ),
        )(p, t, w2)

    # Tiny epilogue: partials are already weighted & scaled by 1/(N*T*H*W).
    return jnp.sum(partials[:, :, :, 0], axis=(0, 1))


def _reference(preds, trues, weights):
    se = (preds - trues) ** 2
    return se.mean(4).mean(3).mean(2).mean(0) * weights


if __name__ == "__main__":
    key = jax.random.PRNGKey(0)
    k1, k2 = jax.random.split(key)

    N, C, T, H, W = 2, 4, 8, 16, 16
    preds = jax.random.normal(k1, (N, C, T, H, W), dtype=jnp.float32)
    trues = jax.random.normal(k2, (N, C, T, H, W), dtype=jnp.float32)
    weights = (jnp.arange(C, dtype=jnp.float32) + 1.0) * 0.5

    out = weighted_spatial_mse_loss(preds, trues, weights)
    out = jax.block_until_ready(out)

    ref = _reference(preds, trues, weights)
    assert out.shape == (C,)
    assert jnp.allclose(out, ref, rtol=1e-5, atol=1e-5), (out, ref)

    print("KERNEL_OK")
</pallas_src>

<mosaic_0001>
module attributes {stable_mosaic.version = 11 : i64} {
  func.func @_wmse_rows_kernel(%arg0: i32, %arg1: i32, %arg2: i32, %arg3: memref<1x4x16x128xf32, #tpu.memory_space<vmem>>, %arg4: memref<1x4x16x128xf32, #tpu.memory_space<vmem>>, %arg5: memref<4x1xf32, #tpu.memory_space<vmem>>, %arg6: memref<1x1x4x1xf32, #tpu.memory_space<vmem>>, %arg7: memref<4x8x128xf32, #tpu.memory_space<vmem>>) attributes {dimension_semantics = [#tpu.dimension_semantics<parallel>, #tpu.dimension_semantics<parallel>, #tpu.dimension_semantics<arbitrary>], iteration_bounds = array<i64: 1, 2, 1>, scalar_prefetch = 0 : i64, scratch_operands = 1 : i64, tpu.core_type = #tpu.core_type<tc>, window_params = [{transform_indices = @transform_0, window_bounds = array<i64: 1, 4, 16, 128>}, {transform_indices = @transform_1, window_bounds = array<i64: 1, 4, 16, 128>}, {pipeline_mode = #tpu.pipeline_mode<synchronous>, transform_indices = @transform_2, window_bounds = array<i64: 4, 1>}, {transform_indices = @transform_3, window_bounds = array<i64: 1, 1, 4, 1>}]} {
    %c0_i32 = arith.constant 0 : i32
    %0 = arith.cmpi eq, %arg2, %c0_i32 : i32
    %1 = arith.extui %0 : i1 to i32
    %c0_i32_0 = arith.constant 0 : i32
    %2 = arith.cmpi ne, %1, %c0_i32_0 : i32
    scf.if %2 {
      %cst_16 = arith.constant 0.000000e+00 : f32
      %17 = vector.broadcast %cst_16 : f32 to vector<4x8x128xf32>
      %c0_17 = arith.constant 0 : index
      %c0_18 = arith.constant 0 : index
      %c0_19 = arith.constant 0 : index
      %18 = vector.load %arg7[%c0_17, %c0_18, %c0_19] : memref<4x8x128xf32, #tpu.memory_space<vmem>>, vector<4x8x128xf32>
      tpu.vector_store %arg7[%c0_17, %c0_18, %c0_19], %17 {strides = array<i32>} : memref<4x8x128xf32, #tpu.memory_space<vmem>>, vector<4x8x128xf32>,
    } else {
    }
    %c0 = arith.constant 0 : index
    %c0_1 = arith.constant 0 : index
    %c0_2 = arith.constant 0 : index
    %c0_3 = arith.constant 0 : index
    %3 = vector.load %arg3[%c0, %c0_1, %c0_2, %c0_3] : memref<1x4x16x128xf32, #tpu.memory_space<vmem>>, vector<1x4x16x128xf32>
    %4 = vector.shape_cast %3 : vector<1x4x16x128xf32> to vector<4x16x128xf32>
    %c0_4 = arith.constant 0 : index
    %c0_5 = arith.constant 0 : index
    %c0_6 = arith.constant 0 : index
    %c0_7 = arith.constant 0 : index
    %5 = vector.load %arg4[%c0_4, %c0_5, %c0_6, %c0_7] : memref<1x4x16x128xf32, #tpu.memory_space<vmem>>, vector<1x4x16x128xf32>
    %6 = vector.shape_cast %5 : vector<1x4x16x128xf32> to vector<4x16x128xf32>
    %7 = arith.subf %4, %6 : vector<4x16x128xf32>
    %8 = arith.mulf %7, %7 : vector<4x16x128xf32>
    %9 = vector.shape_cast %8 : vector<4x16x128xf32> to vector<4x2x8x128xf32>
    %cst = arith.constant dense<0.000000e+00> : vector<4x8x128xf32>
    %10 = vector.multi_reduction <add>, %9, %cst [1] : vector<4x2x8x128xf32> to vector<4x8x128xf32>
    %c0_8 = arith.constant 0 : index
    %c0_9 = arith.constant 0 : index
    %c0_10 = arith.constant 0 : index
    %11 = vector.load %arg7[%c0_8, %c0_9, %c0_10] : memref<4x8x128xf32, #tpu.memory_space<vmem>>, vector<4x8x128xf32>
    %12 = arith.addf %11, %10 : vector<4x8x128xf32>
    %c0_11 = arith.constant 0 : index
    %c0_12 = arith.constant 0 : index
    %c0_13 = arith.constant 0 : index
    %13 = vector.load %arg7[%c0_11, %c0_12, %c0_13] : memref<4x8x128xf32, #tpu.memory_space<vmem>>, vector<4x8x128xf32>
    tpu.vector_store %arg7[%c0_11, %c0_12, %c0_13], %12 {strides = array<i32>} : memref<4x8x128xf32, #tpu.memory_space<vmem>>, vector<4x8x128xf32>,
    %c0_i32_14 = arith.constant 0 : i32
    %14 = arith.cmpi eq, %arg2, %c0_i32_14 : i32
    %15 = arith.extui %14 : i1 to i32
    %c0_i32_15 = arith.constant 0 : i32
    %16 = arith.cmpi ne, %15, %c0_i32_15 : i32
    scf.if %16 {
      %c0_16 = arith.constant 0 : index
      %c0_17 = arith.constant 0 : index
      %c0_18 = arith.constant 0 : index
      %17 = vector.load %arg7[%c0_16, %c0_17, %c0_18] : memref<4x8x128xf32, #tpu.memory_space<vmem>>, vector<4x8x128xf32>
      %cst_19 = arith.constant dense<0.000000e+00> : vector<4x128xf32>
      %18 = vector.multi_reduction <add>, %17, %cst_19 [1] : vector<4x8x128xf32> to vector<4x128xf32>
      %cst_20 = arith.constant dense<0.000000e+00> : vector<4xf32>
      %19 = vector.multi_reduction <add>, %18, %cst_20 [1] : vector<4x128xf32> to vector<4xf32>
      %20 = vector.shape_cast %19 : vector<4xf32> to vector<4x1xf32>
      %cst_21 = arith.constant 2.44140625E-4 : f32
      %21 = vector.broadcast %cst_21 : f32 to vector<4x1xf32>
      %22 = arith.mulf %20, %21 : vector<4x1xf32>
      %c0_22 = arith.constant 0 : index
      %c0_23 = arith.constant 0 : index
      %23 = vector.load %arg5[%c0_22, %c0_23] : memref<4x1xf32, #tpu.memory_space<vmem>>, vector<4x1xf32>
      %24 = arith.mulf %22, %23 : vector<4x1xf32>
      %c0_24 = arith.constant 0 : index
      %c0_25 = arith.constant 0 : index
      %c0_26 = arith.constant 0 : index
      %c0_27 = arith.constant 0 : index
      %25 = vector.load %arg6[%c0_24, %c0_25, %c0_26, %c0_27] : memref<1x1x4x1xf32, #tpu.memory_space<vmem>>, vector<1x1x4x1xf32>
      %26 = vector.shape_cast %25 : vector<1x1x4x1xf32> to vector<4x1xf32>
      %27 = vector.shape_cast %24 : vector<4x1xf32> to vector<1x1x4x1xf32>
      tpu.vector_store %arg6[%c0_24, %c0_25, %c0_26, %c0_27], %27 {strides = array<i32>} : memref<1x1x4x1xf32, #tpu.memory_space<vmem>>, vector<1x1x4x1xf32>,
    } else {
    }
    return
  }
  func.func @transform_0(%arg0: i32, %arg1: i32, %arg2: i32) -> (i32, i32, i32, i32) {
    %c0_i32 = arith.constant 0 : i32
    %c0_i32_0 = arith.constant 0 : i32
    %c0_i32_1 = arith.constant 0 : i32
    return %arg1, %c0_i32, %arg2, %c0_i32_0 : i32, i32, i32, i32
  }
  func.func @transform_1(%arg0: i32, %arg1: i32, %arg2: i32) -> (i32, i32, i32, i32) {
    %c0_i32 = arith.constant 0 : i32
    %c0_i32_0 = arith.constant 0 : i32
    %c0_i32_1 = arith.constant 0 : i32
    return %arg1, %c0_i32, %arg2, %c0_i32_0 : i32, i32, i32, i32
  }
  func.func @transform_2(%arg0: i32, %arg1: i32, %arg2: i32) -> (i32, i32) {
    %c0_i32 = arith.constant 0 : i32
    %c0_i32_0 = arith.constant 0 : i32
    %c0_i32_1 = arith.constant 0 : i32
    return %c0_i32, %c0_i32_0 : i32, i32
  }
  func.func @transform_3(%arg0: i32, %arg1: i32, %arg2: i32) -> (i32, i32, i32, i32) {
    %c0_i32 = arith.constant 0 : i32
    %c0_i32_0 = arith.constant 0 : i32
    %c0_i32_1 = arith.constant 0 : i32
    return %arg0, %arg1, %c0_i32, %c0_i32_0 : i32, i32, i32, i32
  }
}

</mosaic_0001>

<llo_original>
// kernel: tpu_custom_call.1
$region0: #{tpu_custom_call.1}
  #allocation0 [shape = 'u32[]', space=smem, size = 0x4, offset = 0x4, fixed_abs, tag = 'smem constant byte address 0x4 - core index']
  #allocation1 [shape = 'u32[72,128]{1,0:T(1,128)}', space=vmem, size = 0x9000, scoped, tag = 'internal scratch']
  #allocation2 [shape = 'f32[4,8,128]{2,1,0:T(8,128)}', space=vmem, size = 0x4000, scoped, tag = 'scratch operand']
  %s0 = inlined_call_operand.hbm [shape: f32[2,4,16,128], index: 0, kind: input, shape index: {}]
  %s1 = inlined_call_operand.hbm [shape: f32[2,4,16,128], index: 1, kind: input, shape index: {}]
  %s2 = inlined_call_operand.vmem [shape: f32[4,1], index: 2, kind: input, shape index: {}]
  %s3 = inlined_call_operand.vmem [shape: f32[1,2,4,1], index: 3, kind: output, shape index: {}]
  %s4 = sld [smem:[#allocation0]]
  $region61: #{tpu_custom_call.1} parent=0
    _
  %s6 = ssub.s32 1, %s4
  %s7 = scalar_select 0, %s6, %s4
  $region1: #{tpu_custom_call.1} parent=0
    #allocation3 [shape = 'u8[65536]{0}', space=vmem, size = 0x10000, scoped, tag = 'input window, operand 0']
    #allocation4 [shape = 's32[2]{0}', space=sflag, size = 0x8, scoped, tag = 'scoped memory for tpu_custom_call.1']
    #allocation5 [shape = 'u8[65536]{0}', space=vmem, size = 0x10000, scoped, tag = 'input window, operand 1']
    #allocation6 [shape = 's32[2]{0}', space=sflag, size = 0x8, scoped, tag = 'scoped memory for tpu_custom_call.1']
    %8 = vsyncpa [#allocation4], 0
    %s9 = scalar_lea.sflag [#allocation4], 1
    %10 = vsyncpa %s9, 0
    %11 = vsyncpa [#allocation6], 0
    %s12 = scalar_lea.sflag [#allocation6], 1
    %13 = vsyncpa %s12, 0
    loop: start=0, step=1, limit=4
    $region2: #{tpu_custom_call.1} parent=1 // loop_pre_header
      _
    $region3: #{tpu_custom_call.1} parent=1 // loop_header
      %s15 = sphi 0, %s19
      %p16 = scmp.ge.s32.totalorder %s15, 4
      %s22 = sphi 0, %s41
      %s23 = sphi 0, %s37
      %s24 = sphi 0, %s33
      %s25 = sphi 0, %s22
      %s26 = sphi 0, %s23
      %s27 = sphi 0, %s24
      %s28 = sphi 0, %s25
      %s29 = sphi 0, %s26
      %s30 = sphi 0, %s27
      %s46 = sphi 0, %s48
      %s49 = sphi 0, %s46
      %s50 = sphi 0, %s49
      %s66 = sphi 0, %s50
      %s74 = sphi 0, %s76
      %s77 = sphi 0, %s74
      %s78 = sphi 0, %s77
      %s94 = sphi 0, %s78
      %s98 = sphi 0, %s98
      %s100 = sphi 0, %s98
      %s101 = sphi 0, %s100
      %s115 = sphi 0, %s101
      %s123 = sphi 0, %s125
      %s126 = sphi 0, %s123
      %s127 = sphi 0, %s126
      %s143 = sphi 0, %s127
    $region4: #{tpu_custom_call.1} parent=1 // loop_header_branch
      %18 = sbr.rel (%p16) target = $region8
    $region5: #{tpu_custom_call.1} parent=1 // loop_body
      %s20 = ssub.s32 %s15, 1
      %s21 = ssub.s32 %s15, 2
      %s31 = sadd.s32 1, %s24
      %p32 = scmp.ge.s32.totalorder %s31, 1
      %s33 = scalar_select %p32, 0, %s31
      %s34 = sadd.s32 1, %s23
      %s35 = scalar_select %p32, %s34, %s23
      %p36 = scmp.ge.s32.totalorder %s35, 2
      %s37 = scalar_select %p36, 0, %s35
      %s38 = sadd.s32 1, %s22
      %s39 = scalar_select %p36, %s38, %s22
      %p40 = scmp.ge.s32.totalorder %s39, 1
      %s41 = scalar_select %p40, 0, %s39
      %s42 = ssub.s32 %s23, %s37
      %s43 = ssub.s32 %s24, %s33
      %s44 = sor.u32 %s42, %s43
      %p45 = scmp.eq.s32.totalorder %s44, 0
      %s47 = sadd.s32 %s46, 1
      %s48 = scalar_select %p45, %s46, %s47
      %p51 = pneg %p45
      %p52 = scmp.eq.s32.totalorder %s15, 1
      %p53 = por %p51, %p52
      %p54 = scmp.ne.s32.totalorder %s46, %s49
      %p55 = scmp.eq.s32.totalorder %s15, 0
      %p56 = por %p54, %p55
      %p57 = scmp.ne.s32.totalorder %s46, %s49
      %p58 = scmp.eq.s32.totalorder %s20, 1
      %p59 = por %p57, %p58
      %p60 = scmp.ne.s32.totalorder %s49, %s50
      %p61 = scmp.eq.s32.totalorder %s20, 0
      %p62 = por %p60, %p61
      %p63 = scmp.ne.s32.totalorder %s49, %s50
      %p64 = scmp.eq.s32.totalorder %s21, 1
      %p65 = por %p63, %p64
      %p67 = scmp.ne.s32.totalorder %s50, %s66
      %p68 = scmp.eq.s32.totalorder %s21, 0
      %p69 = por %p67, %p68
      %s70 = ssub.s32 %s23, %s37
      %s71 = ssub.s32 %s24, %s33
      %s72 = sor.u32 %s70, %s71
      %p73 = scmp.eq.s32.totalorder %s72, 0
      %s75 = sadd.s32 %s74, 1
      %s76 = scalar_select %p73, %s74, %s75
      %p79 = pneg %p73
      %p80 = scmp.eq.s32.totalorder %s15, 1
      %p81 = por %p79, %p80
      %p82 = scmp.ne.s32.totalorder %s74, %s77
      %p83 = scmp.eq.s32.totalorder %s15, 0
      %p84 = por %p82, %p83
      %p85 = scmp.ne.s32.totalorder %s74, %s77
      %p86 = scmp.eq.s32.totalorder %s20, 1
      %p87 = por %p85, %p86
      %p88 = scmp.ne.s32.totalorder %s77, %s78
      %p89 = scmp.eq.s32.totalorder %s20, 0
      %p90 = por %p88, %p89
      %p91 = scmp.ne.s32.totalorder %s77, %s78
      %p92 = scmp.eq.s32.totalorder %s21, 1
      %p93 = por %p91, %p92
      %p95 = scmp.ne.s32.totalorder %s78, %s94
      %p96 = scmp.eq.s32.totalorder %s21, 0
      %p97 = por %p95, %p96
      %s99 = sadd.s32 %s98, 1
      %p102 = scmp.eq.s32.totalorder %s15, 1
      %p103 = scmp.ne.s32.totalorder %s98, %s100
      %p104 = scmp.eq.s32.totalorder %s15, 0
      %p105 = por %p103, %p104
      %p106 = scmp.ne.s32.totalorder %s98, %s100
      %p107 = scmp.eq.s32.totalorder %s20, 1
      %p108 = por %p106, %p107
      %p109 = scmp.ne.s32.totalorder %s100, %s101
      %p110 = scmp.eq.s32.totalorder %s20, 0
      %p111 = por %p109, %p110
      %p112 = scmp.ne.s32.totalorder %s100, %s101
      %p113 = scmp.eq.s32.totalorder %s21, 1
      %p114 = por %p112, %p113
      %p116 = scmp.ne.s32.totalorder %s101, %s115
      %p117 = scmp.eq.s32.totalorder %s21, 0
      %p118 = por %p116, %p117
      %s119 = ssub.s32 %s22, %s41
      %s120 = ssub.s32 %s23, %s37
      %s121 = sor.u32 %s119, %s120
      %p122 = scmp.eq.s32.totalorder %s121, 0
      %s124 = sadd.s32 %s123, 1
      %s125 = scalar_select %p122, %s123, %s124
      %p128 = pneg %p122
      %p129 = scmp.eq.s32.totalorder %s15, 1
      %p130 = por %p128, %p129
      %p131 = scmp.ne.s32.totalorder %s123, %s126
      %p132 = scmp.eq.s32.totalorder %s15, 0
      %p133 = por %p131, %p132
      %p134 = scmp.ne.s32.totalorder %s123, %s126
      %p135 = scmp.eq.s32.totalorder %s20, 1
      %p136 = por %p134, %p135
      %p137 = scmp.ne.s32.totalorder %s126, %s127
      %p138 = scmp.eq.s32.totalorder %s20, 0
      %p139 = por %p137, %p138
      %p140 = scmp.ne.s32.totalorder %s126, %s127
      %p141 = scmp.eq.s32.totalorder %s21, 1
      %p142 = por %p140, %p141
      %p144 = scmp.ne.s32.totalorder %s127, %s143
      %p145 = scmp.eq.s32.totalorder %s21, 0
      %p146 = por %p144, %p145
      %p147 = scmp.le.s32.totalorder 1, %s15
      %p148 = scmp.lt.s32.totalorder %s15, 3
      %p149 = pnand %p147, %p148
      %p150 = pneg %p149
      // Predicated region
      $region9: #{tpu_custom_call.1} parent=5 // pred_check
        _
      $region10: #{tpu_custom_call.1} parent=5 // pred_check_branch
        %152 = sbr.rel (%p149) target = $region12
      $region11: #{tpu_custom_call.1} parent=5 // pred_region
        %s153 = ssub.s32 %s15, 1
        // Predicated region
        $region13: #{tpu_custom_call.1} parent=11 // pred_check
          %p154 = pneg %p111
        $region14: #{tpu_custom_call.1} parent=11 // pred_check_branch
          %156 = sbr.rel (%p154) target = $region16
        $region15: #{tpu_custom_call.1} parent=11 // pred_region
          _
        $region16: #{tpu_custom_call.1} parent=11 // pred_fallthru
          _
      $region12: #{tpu_custom_call.1} parent=5 // pred_fallthru
        _
      %p157 = scmp.lt.s32.totalorder %s15, 2
      // Predicated region
      $region17: #{tpu_custom_call.1} parent=5 // pred_check
        %p158 = pneg %p157
      $region18: #{tpu_custom_call.1} parent=5 // pred_check_branch
        %160 = sbr.rel (%p158) target = $region20
      $region19: #{tpu_custom_call.1} parent=5 // pred_region
        // Predicated region
        $region21: #{tpu_custom_call.1} parent=19 // pred_check
          %p161 = pneg %p56
        $region22: #{tpu_custom_call.1} parent=19 // pred_check_branch
          %163 = sbr.rel (%p161) target = $region24
        $region23: #{tpu_custom_call.1} parent=19 // pred_region
          %s164 = sand.u32 %s46, 1
          %s165 = scalar_lea.sflag [#allocation4], %s164
          %s166 = sand.u32 %s46, 1
          %s167 = smul.addr %s166, 64
          %s168 = scalar_lea.vmem [#allocation3], %s167
          %s169 = smul.u32 2, %s24
          %171 = vsyncadd %s165, 0
          %s172 = smul.addr %s23, 8
          %s173 = sadd.s32 %s169, %s172
          %s174 = smul.addr %s173, 8
          %s175 = scalar_lea.hbm %s0, %s174
          %s176 = sshll.u32 %s175, 4
          %s177 = int_to_ptr.hbm [resolvable:$true] %s176
          %s178 = sshll.u32 %s168, 4
          %s179 = int_to_ptr.vmem [resolvable:$true] %s178
          %184 = dma.hbm_to_vmem [thread:$0]  %s177, 1024, %s179, %s165, 128, 128, 8
        $region24: #{tpu_custom_call.1} parent=19 // pred_fallthru
          _
        // Predicated region
        $region25: #{tpu_custom_call.1} parent=19 // pred_check
          %p185 = pneg %p84
        $region26: #{tpu_custom_call.1} parent=19 // pred_check_branch
          %187 = sbr.rel (%p185) target = $region28
        $region27: #{tpu_custom_call.1} parent=19 // pred_region
          %s188 = sand.u32 %s74, 1
          %s189 = scalar_lea.sflag [#allocation6], %s188
          %s190 = sand.u32 %s74, 1
          %s191 = smul.addr %s190, 64
          %s192 = scalar_lea.vmem [#allocation5], %s191
          %s193 = smul.u32 2, %s24
          %195 = vsyncadd %s189, 0
          %s196 = smul.addr %s23, 8
          %s197 = sadd.s32 %s193, %s196
          %s198 = smul.addr %s197, 8
          %s199 = scalar_lea.hbm %s1, %s198
          %s200 = sshll.u32 %s199, 4
          %s201 = int_to_ptr.hbm [resolvable:$true] %s200
          %s202 = sshll.u32 %s192, 4
          %s203 = int_to_ptr.vmem [resolvable:$true] %s202
          %208 = dma.hbm_to_vmem [thread:$0]  %s201, 1024, %s203, %s189, 128, 128, 8
        $region28: #{tpu_custom_call.1} parent=19 // pred_fallthru
          _
      $region20: #{tpu_custom_call.1} parent=5 // pred_fallthru
        _
      %p209 = scmp.le.s32.totalorder 1, %s15
      %p210 = scmp.lt.s32.totalorder %s15, 3
      %p211 = pnand %p209, %p210
      %p212 = pneg %p211
      // Predicated region
      $region29: #{tpu_custom_call.1} parent=5 // pred_check
        _
      $region30: #{tpu_custom_call.1} parent=5 // pred_check_branch
        %214 = sbr.rel (%p211) target = $region32
      $region31: #{tpu_custom_call.1} parent=5 // pred_region
        %s215 = ssub.s32 %s15, 1
        %s216 = sand.u32 %s49, 1
        %s217 = scalar_lea.sflag [#allocation4], %s216
        %s218 = sand.u32 %s49, 1
        %s219 = smul.addr %s218, 64
        %s220 = scalar_lea.vmem [#allocation3], %s219
        // Predicated region
        $region33: #{tpu_custom_call.1} parent=31 // pred_check
          %p221 = pneg %p62
        $region34: #{tpu_custom_call.1} parent=31 // pred_check_branch
          %223 = sbr.rel (%p221) target = $region36
        $region35: #{tpu_custom_call.1} parent=31 // pred_region
          %225 = dma.done %s217, 1024
        $region36: #{tpu_custom_call.1} parent=31 // pred_fallthru
          _
        %s226 = sand.u32 %s77, 1
        %s227 = scalar_lea.sflag [#allocation6], %s226
        %s228 = sand.u32 %s77, 1
        %s229 = smul.addr %s228, 64
        %s230 = scalar_lea.vmem [#allocation5], %s229
        // Predicated region
        $region37: #{tpu_custom_call.1} parent=31 // pred_check
          %p231 = pneg %p90
        $region38: #{tpu_custom_call.1} parent=31 // pred_check_branch
          %233 = sbr.rel (%p231) target = $region40
        $region39: #{tpu_custom_call.1} parent=31 // pred_region
          %235 = dma.done %s227, 1024
        $region40: #{tpu_custom_call.1} parent=31 // pred_fallthru
          _
        %s236 = sand.u32 %s49, 1
        %s237 = scalar_lea.sflag [#allocation4], %s236
        %s238 = sand.u32 %s49, 1
        %s239 = smul.addr %s238, 64
        %s240 = scalar_lea.vmem [#allocation3], %s239
        %p241 = pneg %p62
        %p242 = pneg %p59
        %s243 = sand.u32 %s77, 1
        %s244 = scalar_lea.sflag [#allocation6], %s243
        %s245 = sand.u32 %s77, 1
        %s246 = smul.addr %s245, 64
        %s247 = scalar_lea.vmem [#allocation5], %s246
        %p248 = pneg %p90
        %p249 = pneg %p87
        %p250 = pneg %p111
        %p251 = pneg %p108
        %p252 = pneg %p139
        %p253 = pneg %p136
        %p254 = scmp.lt.s32.totalorder %s25, 0
        %s255 = scalar_select %p254, %s25, 0
        %p256 = scmp.lt.s32.totalorder %s26, 1
        %s257 = scalar_select %p256, %s26, 1
        %s258 = smul.addr %s255, 2
        %s259 = sadd.s32 %s257, %s258
        %s260 = smul.addr %s259, 4
        %s261 = scalar_lea.vmem %s3, %s260
        %s262 = smul.u32 2, %s27
        %s263 = smul.u32 2, %s27
        %p264 = scmp.lt.s32.totalorder %s25, 0
        %s265 = scalar_select %p264, %s25, 0
        %p266 = scmp.lt.s32.totalorder %s26, 1
        %s267 = scalar_select %p266, %s26, 1
        %s268 = smul.addr %s265, 2
        %s269 = sadd.s32 %s267, %s268
        %s270 = smul.addr %s269, 4
        %s271 = scalar_lea.vmem %s3, %s270
        %p272 = scmp.eq.s32.totalorder %s27, 0
        // Predicated region
        $region41: #{tpu_custom_call.1} parent=31 // pred_check
          %p273 = pneg %p272
        $region42: #{tpu_custom_call.1} parent=31 // pred_check_branch
          %275 = sbr.rel (%p273) target = $region44
        $region43: #{tpu_custom_call.1} parent=31 // pred_region
          %276 = vst [vmem:[#allocation2] sm:$0xff] 0.0
          %277 = vst [vmem:[#allocation2 + $0x8] sm:$0xff] 0.0
          %278 = vst [vmem:[#allocation2 + $0x10] sm:$0xff] 0.0
          %279 = vst [vmem:[#allocation2 + $0x18] sm:$0xff] 0.0
        $region44: #{tpu_custom_call.1} parent=31 // pred_fallthru
          _
        %v280 = vld [vmem:[%s220] sm:$0xff]
        %v281 = vld [vmem:[%s220 + $0x8] sm:$0xff]
        %v282 = vld [vmem:[%s220 + $0x10] sm:$0xff]
        %v283 = vld [vmem:[%s220 + $0x18] sm:$0xff]
        %v284 = vld [vmem:[%s220 + $0x20] sm:$0xff]
        %v285 = vld [vmem:[%s220 + $0x28] sm:$0xff]
        %v286 = vld [vmem:[%s220 + $0x30] sm:$0xff]
        %v287 = vld [vmem:[%s220 + $0x38] sm:$0xff]
        %v288 = vld [vmem:[%s230] sm:$0xff]
        %v289 = vld [vmem:[%s230 + $0x8] sm:$0xff]
        %v290 = vld [vmem:[%s230 + $0x10] sm:$0xff]
        %v291 = vld [vmem:[%s230 + $0x18] sm:$0xff]
        %v292 = vld [vmem:[%s230 + $0x20] sm:$0xff]
        %v293 = vld [vmem:[%s230 + $0x28] sm:$0xff]
        %v294 = vld [vmem:[%s230 + $0x30] sm:$0xff]
        %v295 = vld [vmem:[%s230 + $0x38] sm:$0xff]
        %v296 = vsub.f32 %v280, %v288
        %v297 = vsub.f32 %v281, %v289
        %v298 = vsub.f32 %v282, %v290
        %v299 = vsub.f32 %v283, %v291
        %v300 = vsub.f32 %v284, %v292
        %v301 = vsub.f32 %v285, %v293
        %v302 = vsub.f32 %v286, %v294
        %v303 = vsub.f32 %v287, %v295
        %v304 = vmul.f32 %v296, %v296
        %v305 = vmul.f32 %v297, %v297
        %v306 = vmul.f32 %v298, %v298
        %v307 = vmul.f32 %v299, %v299
        %v308 = vmul.f32 %v300, %v300
        %v309 = vmul.f32 %v301, %v301
        %v310 = vmul.f32 %v302, %v302
        %v311 = vmul.f32 %v303, %v303
        %v312 = vadd.f32 %v304, %v305
        %v313 = vadd.f32 %v306, %v307
        %v314 = vadd.f32 %v308, %v309
        %v315 = vadd.f32 %v310, %v311
        %v316 = vld [vmem:[#allocation2] sm:$0xff]
        %v317 = vld [vmem:[#allocation2 + $0x8] sm:$0xff]
        %v318 = vld [vmem:[#allocation2 + $0x10] sm:$0xff]
        %v319 = vld [vmem:[#allocation2 + $0x18] sm:$0xff]
        %v320 = vadd.f32 %v316, %v312
        %v321 = vadd.f32 %v317, %v313
        %v322 = vadd.f32 %v318, %v314
        %v323 = vadd.f32 %v319, %v315
        %324 = vst [vmem:[#allocation2] sm:$0xff] %v320
        %325 = vst [vmem:[#allocation2 + $0x8] sm:$0xff] %v321
        %326 = vst [vmem:[#allocation2 + $0x10] sm:$0xff] %v322
        %327 = vst [vmem:[#allocation2 + $0x18] sm:$0xff] %v323
        // Predicated region
        $region45: #{tpu_custom_call.1} parent=31 // pred_check
          %p328 = pneg %p272
        $region46: #{tpu_custom_call.1} parent=31 // pred_check_branch
          %330 = sbr.rel (%p328) target = $region48
        $region47: #{tpu_custom_call.1} parent=31 // pred_region
          %v331 = vld [vmem:[#allocation2] sm:$0xff]
          %v332 = vld [vmem:[#allocation2 + $0x8] sm:$0xff]
          %v333 = vld [vmem:[#allocation2 + $0x10] sm:$0xff]
          %v334 = vld [vmem:[#allocation2 + $0x18] sm:$0xff]
          %v335 = vrot.slane %v331, 4
          %v336 = vadd.f32 %v331, %v335
          %v337 = vrot.slane %v336, 2
          %v338 = vadd.f32 %v336, %v337
          %v339 = vrot.slane %v338, 1
          %v340 = vadd.f32 %v338, %v339
          %v341 = vrot.slane %v332, 4
          %v342 = vadd.f32 %v332, %v341
          %v343 = vrot.slane %v342, 2
          %v344 = vadd.f32 %v342, %v343
          %v345 = vrot.slane %v344, 1
          %v346 = vadd.f32 %v344, %v345
          %v347 = vrot.slane %v333, 4
          %v348 = vadd.f32 %v333, %v347
          %v349 = vrot.slane %v348, 2
          %v350 = vadd.f32 %v348, %v349
          %v351 = vrot.slane %v350, 1
          %v352 = vadd.f32 %v350, %v351
          %v353 = vrot.slane %v334, 4
          %v354 = vadd.f32 %v334, %v353
          %v355 = vrot.slane %v354, 2
          %v356 = vadd.f32 %v354, %v355
          %v357 = vrot.slane %v356, 1
          %v358 = vadd.f32 %v356, %v357
          %vm363 = vcmask 1041409
          %v364 = vsel %vm363, %v346, %v340
          %vm365 = vcmask 1042434
          %v366 = vsel %vm365, %v352, %v364
          %vm367 = vcmask 1043459
          %v368 = vsel %vm367, %v358, %v366
          %vm370 = vcmask 1043456
          %v371 = vsel %vm370, %v368, 0.0
          %372 = vadd.xlane.f32.xlu0 %v371
          %v373 = vpop.xlane.xlu0 %372
          %v374 = vmul.f32 %v373, 0.00024414063
          %v375 = vld [vmem:[%s2] sm:$0xf]
          %v376 = vmul.f32 %v374, %v375
          %vm377 = vcmask 3072
          %378 = vst.msk [vmem:[%s271] sm:$0xf] %vm377, %v376
        $region48: #{tpu_custom_call.1} parent=31 // pred_fallthru
          _
        %p379 = scmp.lt.s32.totalorder %s25, 0
        %s380 = scalar_select %p379, %s25, 0
        %p381 = scmp.lt.s32.totalorder %s26, 1
        %s382 = scalar_select %p381, %s26, 1
        %s383 = smul.addr %s380, 2
        %s384 = sadd.s32 %s382, %s383
        %s385 = smul.addr %s384, 4
        %s386 = scalar_lea.vmem %s3, %s385
        // Predicated region
        $region49: #{tpu_custom_call.1} parent=31 // pred_check
          %p387 = pneg %p136
        $region50: #{tpu_custom_call.1} parent=31 // pred_check_branch
          %389 = sbr.rel (%p387) target = $region52
        $region51: #{tpu_custom_call.1} parent=31 // pred_region
          _
        $region52: #{tpu_custom_call.1} parent=31 // pred_fallthru
          _
      $region32: #{tpu_custom_call.1} parent=5 // pred_fallthru
        _
      %p390 = scmp.le.s32.totalorder 2, %s15
      // Predicated region
      $region53: #{tpu_custom_call.1} parent=5 // pred_check
        %p391 = pneg %p390
      $region54: #{tpu_custom_call.1} parent=5 // pred_check_branch
        %393 = sbr.rel (%p391) target = $region56
      $region55: #{tpu_custom_call.1} parent=5 // pred_region
        %s394 = ssub.s32 %s15, 2
        // Predicated region
        $region57: #{tpu_custom_call.1} parent=55 // pred_check
          %p395 = pneg %p142
        $region58: #{tpu_custom_call.1} parent=55 // pred_check_branch
          %397 = sbr.rel (%p395) target = $region60
        $region59: #{tpu_custom_call.1} parent=55 // pred_region
          %p398 = scmp.lt.s32.totalorder %s28, 0
          %s399 = scalar_select %p398, %s28, 0
          %p400 = scmp.lt.s32.totalorder %s29, 1
          %s401 = scalar_select %p400, %s29, 1
          %s402 = smul.addr %s399, 2
          %s403 = sadd.s32 %s401, %s402
          %s404 = smul.addr %s403, 4
          %s405 = scalar_lea.vmem %s3, %s404
        $region60: #{tpu_custom_call.1} parent=55 // pred_fallthru
          _
      $region56: #{tpu_custom_call.1} parent=5 // pred_fallthru
        _
    $region6: #{tpu_custom_call.1} parent=1 // loop_footer
      %s19 = sadd.s32 1, %s15
    $region7: #{tpu_custom_call.1} parent=1 // loop_footer_branch
      %14 = sbr.rel target = $region3
    $region8: #{tpu_custom_call.1} parent=1 // loop_exit
      _
    %406 = vsyncpa [#allocation4], 1
    %s407 = scalar_lea.sflag [#allocation4], 1
    %408 = vsyncpa %s407, 1
    %409 = vsyncpa [#allocation6], 1
    %s410 = scalar_lea.sflag [#allocation6], 1
    %411 = vsyncpa %s410, 1

</llo_original>
